<compile_context>
chip_gen: v7x
topology: tpu7x:2x2x1
jax: 0.10.0
libtpu: 0.0.40
codegen_flags: <defaults>
</compile_context>

<pallas_src>
import functools

import jax
import jax.numpy as jnp
from jax.experimental import pallas as pl
from jax.experimental.pallas import tpu as pltpu


# ----------------------------- config ---------------------------------------
CONFIG = dict(
    pool_H=4, pool_W=4, stride_len=16,      # roi_pool params (unused in forward)
    det_hidden=32,
    det_classes=4,
    det_std_cls=0.01,
    det_std_box=0.001,
    det_bias=0.0,
)

LANE = 128
SUB = 16        # bf16 sublane pack; keep the batch tile a multiple of this


def _round_up(n, m):
    return ((n + m - 1) // m) * m


# ----------------------------- kernel ---------------------------------------
def _det_head_kernel(num_classes, x_ref, w1_ref, b1_ref, w2_ref, b2_ref,
                     wh_ref, bh_ref, out_ref):
    """Fused fc -> (cls | softmax | bbox) on one lane-dense (tb, 128) slab."""
    # mask for the duplicated-logit (softmax) lanes — hoisted above the matmuls
    col = jax.lax.broadcasted_iota(jnp.int32, out_ref.shape, 1)
    soft_mask = (col >= num_classes) & (col < 2 * num_classes)

    # fc: Linear + ReLU, Linear + ReLU. bf16 operands, f32 accumulation.
    x = x_ref[...]                                                   # bf16
    h = jnp.dot(x, w1_ref[...], preferred_element_type=jnp.float32) + b1_ref[...]
    h = jnp.maximum(h, 0.0).astype(jnp.bfloat16)
    h = jnp.dot(h, w2_ref[...], preferred_element_type=jnp.float32) + b2_ref[...]
    h = jnp.maximum(h, 0.0).astype(jnp.bfloat16)

    # One fused, 128-lane-wide head matmul (logits | logits-copy | bbox | pad).
    head = jnp.dot(h, wh_ref[...], preferred_element_type=jnp.float32) + bh_ref[...]

    # Numerically stable softmax over the duplicated-logit lanes at full lane
    # width.  Masking *before* the exp keeps non-softmax lanes at exp(-inf)=0,
    # so nothing overflows on the bbox / padding lanes.
    m = jnp.max(jnp.where(soft_mask, head, -jnp.inf), axis=1, keepdims=True)
    e = jnp.exp(jnp.where(soft_mask, head - m, -jnp.inf))
    denom = jnp.sum(e, axis=1, keepdims=True)
    soft = e * pl.reciprocal(denom, approx=False)

    # Single unmasked, lane-dense store of the whole output slab.
    out_ref[...] = jnp.where(soft_mask, soft, head)


# ----------------------------- param preparation (one-time) ------------------
def prepare_params(params):
    """Pad / fuse / cast weights once per weight update (NOT per forward)."""
    w1, b1, w2, b2, wc, bc, wb, bb = params
    in_dim, hidden = w1.shape
    C = wc.shape[1]
    HP = _round_up(hidden, LANE)     # padded hidden width (lane-dense intermediates)
    NP = LANE                        # padded fused-head output width
    assert 6 * C <= NP, "fused head layout assumes 6*det_classes <= 128"

    f32, bf16 = jnp.float32, jnp.bfloat16

    # fc weights: zero-pad hidden dim to 128 lanes, cast to bf16 (single-pass MXU)
    w1p = jnp.zeros((in_dim, HP), f32).at[:, :hidden].set(w1).astype(bf16)
    b1p = jnp.zeros((1, HP), f32).at[:, :hidden].set(b1.reshape(1, -1))
    w2p = jnp.zeros((HP, HP), f32).at[:hidden, :hidden].set(w2).astype(bf16)
    b2p = jnp.zeros((1, HP), f32).at[:, :hidden].set(b2.reshape(1, -1))

    # fuse cls + bbox heads into one 128-lane-padded weight (bf16) / bias (f32)
    wh = jnp.zeros((HP, NP), f32)
    wh = wh.at[:hidden, 0:C].set(wc)             # logits
    wh = wh.at[:hidden, C:2 * C].set(wc)         # logits copy (softmax source)
    wh = wh.at[:hidden, 2 * C:6 * C].set(wb)     # bbox (flat)
    wh = wh.astype(bf16)
    bh = jnp.zeros((1, NP), f32)
    bh = bh.at[:, 0:C].set(bc.reshape(1, -1))
    bh = bh.at[:, C:2 * C].set(bc.reshape(1, -1))
    bh = bh.at[:, 2 * C:6 * C].set(bb.reshape(1, -1))

    prepared = (w1p, b1p, w2p, b2p, wh, bh)
    return jax.device_put(prepared), C


# ----------------------------- wrapper ---------------------------------------
@functools.partial(jax.jit, static_argnames=("num_classes", "tile_b"))
def detection_head_forward(x, prepared, num_classes, tile_b=1024):
    """Runs the fused DetectionHead forward.

    Returns (cls_logits, cls_softmax, bbox_reg) with shapes
    (B, C), (B, C), (B, C, 4) — matching the PyTorch module.
    """
    w1p, b1p, w2p, b2p, wh, bh = prepared
    B, in_dim = x.shape
    HP = w1p.shape[1]
    NP = wh.shape[1]
    C = num_classes

    # bf16 activations into the kernel (half the x-tile HBM read).
    x = x.astype(jnp.bfloat16)

    # ---- batch tile: big (amortize ~0.35us/step), bf16-sublane aligned, and
    #      capped at ceil(B/2) so v7x's 2 TensorCores both get work. ----------
    tb = min(tile_b, _round_up(B, SUB))
    if B >= 2 * SUB:
        tb = min(tb, _round_up(pl.cdiv(B, 2), SUB))
    B_pad = _round_up(B, tb)
    # Fast path: no copy when B is already a tile multiple; otherwise pad only
    # the tail (at most one partial tile) with a single jnp.pad.
    x_in = x if B_pad == B else jnp.pad(x, ((0, B_pad - B), (0, 0)))

    # VMEM budget: 2 x-buffers + 2 out-buffers + weights (+ headroom). Keeps a
    # raised tile_b legal under v5e's 16MiB scoped default and v7x's 64MiB VMEM.
    vmem_bytes = (2 * tb * in_dim * 2 + 2 * tb * NP * 4
                  + 2 * (in_dim * HP + HP * HP + HP * NP) + 3 * 4 * max(HP, NP))
    vmem_limit = min(max(2 * vmem_bytes, 4 << 20), 32 << 20)

    slab = pl.pallas_call(
        functools.partial(_det_head_kernel, C),
        out_shape=jax.ShapeDtypeStruct((B_pad, NP), jnp.float32),
        grid=(B_pad // tb,),
        in_specs=[
            pl.BlockSpec((tb, in_dim), lambda i: (i, 0)),   # x tile (pipelined)
            pl.BlockSpec((in_dim, HP), lambda i: (0, 0)),   # w1 (VMEM-resident)
            pl.BlockSpec((1, HP), lambda i: (0, 0)),        # b1
            pl.BlockSpec((HP, HP), lambda i: (0, 0)),       # w2
            pl.BlockSpec((1, HP), lambda i: (0, 0)),        # b2
            pl.BlockSpec((HP, NP), lambda i: (0, 0)),       # fused head weight
            pl.BlockSpec((1, NP), lambda i: (0, 0)),        # fused head bias
        ],
        out_specs=pl.BlockSpec((tb, NP), lambda i: (i, 0)),
        compiler_params=pltpu.CompilerParams(
            dimension_semantics=("parallel",),
            vmem_limit_bytes=vmem_limit),
    )(x_in, w1p, b1p, w2p, b2p, wh, bh)

    # glue: slice the lane-dense slab back into the module's three outputs
    cls_logits = slab[:B, 0:C]
    cls_softmax = slab[:B, C:2 * C]
    bbox_reg = slab[:B, 2 * C:6 * C].reshape(B, C, 4)
    return cls_logits, cls_softmax, bbox_reg


# ----------------------------- param init -----------------------------------
def init_params(key, in_dim, config=CONFIG):
    hidden = config["det_hidden"]
    classes = config["det_classes"]
    k = jax.random.split(key, 4)

    # fc (two Linear+ReLU); deterministic stand-in for PyTorch Linear init.
    w1 = jax.random.normal(k[0], (in_dim, hidden), jnp.float32) * 0.02
    b1 = jnp.zeros((hidden,), jnp.float32)
    w2 = jax.random.normal(k[1], (hidden, hidden), jnp.float32) * 0.02
    b2 = jnp.zeros((hidden,), jnp.float32)

    # cls / bbox heads: normal_(std=det_std_*) weights, constant_(det_bias) biases.
    wc = jax.random.normal(k[2], (hidden, classes), jnp.float32) * config["det_std_cls"]
    bc = jnp.full((classes,), config["det_bias"], jnp.float32)
    wb = jax.random.normal(k[3], (hidden, classes * 4), jnp.float32) * config["det_std_box"]
    bb = jnp.full((classes * 4,), config["det_bias"], jnp.float32)

    return (w1, b1, w2, b2, wc, bc, wb, bb)


# ----------------------------- reference (plain JAX) -------------------------
def _reference(x, params):
    w1, b1, w2, b2, wc, bc, wb, bb = params
    h = jnp.maximum(x @ w1 + b1, 0.0)
    h = jnp.maximum(h @ w2 + b2, 0.0)
    logits = h @ wc + bc
    soft = jax.nn.softmax(logits, axis=1)
    bbox = (h @ wb + bb).reshape(x.shape[0], -1, 4)
    return logits, soft, bbox


# ----------------------------- main ------------------------------------------
if __name__ == "__main__":
    key = jax.random.PRNGKey(0)
    kx, kp = jax.random.split(key)

    B = 8                                             # number of ROIs
    in_dim = CONFIG["pool_H"] * CONFIG["pool_W"] * 4  # flattened pooled features = 64
    x = jax.random.normal(kx, (B, in_dim), jnp.float32)

    params = init_params(kp, in_dim, CONFIG)
    prepared, num_classes = prepare_params(params)    # one-time pad / fuse / bf16 cast

    cls_logits, cls_softmax, bbox_reg = detection_head_forward(x, prepared, num_classes)
    jax.block_until_ready((cls_logits, cls_softmax, bbox_reg))

    # sanity check against a plain-JAX f32 reference (kernel runs bf16 matmuls)
    ref_logits, ref_soft, ref_bbox = _reference(x, params)
    assert cls_logits.shape == (B, CONFIG["det_classes"])
    assert cls_softmax.shape == (B, CONFIG["det_classes"])
    assert bbox_reg.shape == (B, CONFIG["det_classes"], 4)
    assert jnp.allclose(cls_logits, ref_logits, atol=3e-2, rtol=3e-2), "logits mismatch"
    assert jnp.allclose(bbox_reg, ref_bbox, atol=3e-2, rtol=3e-2), "bbox mismatch"
    assert jnp.allclose(cls_softmax, ref_soft, atol=2e-2, rtol=2e-2), "softmax mismatch"

    print("KERNEL_OK")
</pallas_src>

<mosaic_0001>
module attributes {stable_mosaic.version = 11 : i64} {
  func.func @_det_head_kernel(%arg0: i32, %arg1: memref<16x64xbf16, #tpu.memory_space<vmem>>, %arg2: memref<64x128xbf16, #tpu.memory_space<vmem>>, %arg3: memref<1x128xf32, #tpu.memory_space<vmem>>, %arg4: memref<128x128xbf16, #tpu.memory_space<vmem>>, %arg5: memref<1x128xf32, #tpu.memory_space<vmem>>, %arg6: memref<128x128xbf16, #tpu.memory_space<vmem>>, %arg7: memref<1x128xf32, #tpu.memory_space<vmem>>, %arg8: memref<16x128xf32, #tpu.memory_space<vmem>>) attributes {dimension_semantics = [#tpu.dimension_semantics<parallel>], iteration_bounds = array<i64: 1>, scalar_prefetch = 0 : i64, scratch_operands = 0 : i64, tpu.core_type = #tpu.core_type<tc>, window_params = [{transform_indices = @transform_0, window_bounds = array<i64: 16, 64>}, {pipeline_mode = #tpu.pipeline_mode<synchronous>, transform_indices = @transform_1, window_bounds = array<i64: 64, 128>}, {pipeline_mode = #tpu.pipeline_mode<synchronous>, transform_indices = @transform_2, window_bounds = array<i64: 1, 128>}, {pipeline_mode = #tpu.pipeline_mode<synchronous>, transform_indices = @transform_3, window_bounds = array<i64: 128, 128>}, {pipeline_mode = #tpu.pipeline_mode<synchronous>, transform_indices = @transform_4, window_bounds = array<i64: 1, 128>}, {pipeline_mode = #tpu.pipeline_mode<synchronous>, transform_indices = @transform_5, window_bounds = array<i64: 128, 128>}, {pipeline_mode = #tpu.pipeline_mode<synchronous>, transform_indices = @transform_6, window_bounds = array<i64: 1, 128>}, {transform_indices = @transform_7, window_bounds = array<i64: 16, 128>}]} {
    %0 = tpu.iota {dimensions = array<i32: 1>} : vector<16x128xi32>
    %c4_i32 = arith.constant 4 : i32
    %1 = vector.broadcast %c4_i32 : i32 to vector<16x128xi32>
    %2 = arith.cmpi sge, %0, %1 : vector<16x128xi32>
    %c8_i32 = arith.constant 8 : i32
    %3 = vector.broadcast %c8_i32 : i32 to vector<16x128xi32>
    %4 = arith.cmpi slt, %0, %3 : vector<16x128xi32>
    %5 = arith.andi %2, %4 : vector<16x128xi1>
    %c0 = arith.constant 0 : index
    %c0_0 = arith.constant 0 : index
    %6 = vector.load %arg1[%c0, %c0_0] : memref<16x64xbf16, #tpu.memory_space<vmem>>, vector<16x64xbf16>
    %c0_1 = arith.constant 0 : index
    %c0_2 = arith.constant 0 : index
    %7 = vector.load %arg2[%c0_1, %c0_2] : memref<64x128xbf16, #tpu.memory_space<vmem>>, vector<64x128xbf16>
    %cst = arith.constant dense<0.000000e+00> : vector<16x128xf32>
    %8 = tpu.matmul %6, %7, %cst {dimension_numbers = #tpu.dot_dimension_numbers<[1], [0], [0], [1], [0, 0, 1, 1], [], []>} : vector<16x64xbf16>, vector<64x128xbf16>, vector<16x128xf32> -> vector<16x128xf32>
    %c0_3 = arith.constant 0 : index
    %c0_4 = arith.constant 0 : index
    %9 = vector.load %arg3[%c0_3, %c0_4] : memref<1x128xf32, #tpu.memory_space<vmem>>, vector<1x128xf32>
    %10 = vector.broadcast %9 : vector<1x128xf32> to vector<16x128xf32>
    %11 = arith.addf %8, %10 : vector<16x128xf32>
    %cst_5 = arith.constant 0.000000e+00 : f32
    %12 = vector.broadcast %cst_5 : f32 to vector<16x128xf32>
    %13 = arith.maximumf %11, %12 : vector<16x128xf32>
    %14 = arith.truncf %13 : vector<16x128xf32> to vector<16x128xbf16>
    %c0_6 = arith.constant 0 : index
    %c0_7 = arith.constant 0 : index
    %15 = vector.load %arg4[%c0_6, %c0_7] : memref<128x128xbf16, #tpu.memory_space<vmem>>, vector<128x128xbf16>
    %cst_8 = arith.constant dense<0.000000e+00> : vector<16x128xf32>
    %16 = tpu.matmul %14, %15, %cst_8 {dimension_numbers = #tpu.dot_dimension_numbers<[1], [0], [0], [1], [0, 0, 1, 1], [], []>} : vector<16x128xbf16>, vector<128x128xbf16>, vector<16x128xf32> -> vector<16x128xf32>
    %c0_9 = arith.constant 0 : index
    %c0_10 = arith.constant 0 : index
    %17 = vector.load %arg5[%c0_9, %c0_10] : memref<1x128xf32, #tpu.memory_space<vmem>>, vector<1x128xf32>
    %18 = vector.broadcast %17 : vector<1x128xf32> to vector<16x128xf32>
    %19 = arith.addf %16, %18 : vector<16x128xf32>
    %cst_11 = arith.constant 0.000000e+00 : f32
    %20 = vector.broadcast %cst_11 : f32 to vector<16x128xf32>
    %21 = arith.maximumf %19, %20 : vector<16x128xf32>
    %22 = arith.truncf %21 : vector<16x128xf32> to vector<16x128xbf16>
    %c0_12 = arith.constant 0 : index
    %c0_13 = arith.constant 0 : index
    %23 = vector.load %arg6[%c0_12, %c0_13] : memref<128x128xbf16, #tpu.memory_space<vmem>>, vector<128x128xbf16>
    %cst_14 = arith.constant dense<0.000000e+00> : vector<16x128xf32>
    %24 = tpu.matmul %22, %23, %cst_14 {dimension_numbers = #tpu.dot_dimension_numbers<[1], [0], [0], [1], [0, 0, 1, 1], [], []>} : vector<16x128xbf16>, vector<128x128xbf16>, vector<16x128xf32> -> vector<16x128xf32>
    %c0_15 = arith.constant 0 : index
    %c0_16 = arith.constant 0 : index
    %25 = vector.load %arg7[%c0_15, %c0_16] : memref<1x128xf32, #tpu.memory_space<vmem>>, vector<1x128xf32>
    %26 = vector.broadcast %25 : vector<1x128xf32> to vector<16x128xf32>
    %27 = arith.addf %24, %26 : vector<16x128xf32>
    %cst_17 = arith.constant 0xFF800000 : f32
    %28 = vector.broadcast %cst_17 : f32 to vector<16x128xf32>
    %29 = arith.select %5, %27, %28 : vector<16x128xi1>, vector<16x128xf32>
    %cst_18 = arith.constant dense<0xFF800000> : vector<16xf32>
    %30 = vector.multi_reduction <maximumf>, %29, %cst_18 [1] : vector<16x128xf32> to vector<16xf32>
    %31 = vector.shape_cast %30 : vector<16xf32> to vector<16x1xf32>
    %32 = vector.broadcast %31 : vector<16x1xf32> to vector<16x128xf32>
    %33 = arith.subf %27, %32 : vector<16x128xf32>
    %cst_19 = arith.constant 0xFF800000 : f32
    %34 = vector.broadcast %cst_19 : f32 to vector<16x128xf32>
    %35 = arith.select %5, %33, %34 : vector<16x128xi1>, vector<16x128xf32>
    %36 = math.exp %35 : vector<16x128xf32>
    %cst_20 = arith.constant dense<0.000000e+00> : vector<16xf32>
    %37 = vector.multi_reduction <add>, %36, %cst_20 [1] : vector<16x128xf32> to vector<16xf32>
    %38 = vector.shape_cast %37 : vector<16xf32> to vector<16x1xf32>
    %39 = tpu.reciprocal %38 : vector<16x1xf32> -> vector<16x1xf32>
    %40 = vector.broadcast %39 : vector<16x1xf32> to vector<16x128xf32>
    %41 = arith.mulf %36, %40 : vector<16x128xf32>
    %42 = arith.select %5, %41, %27 : vector<16x128xi1>, vector<16x128xf32>
    %c0_21 = arith.constant 0 : index
    %c0_22 = arith.constant 0 : index
    %43 = vector.load %arg8[%c0_21, %c0_22] : memref<16x128xf32, #tpu.memory_space<vmem>>, vector<16x128xf32>
    tpu.vector_store %arg8[%c0_21, %c0_22], %42 {strides = array<i32>} : memref<16x128xf32, #tpu.memory_space<vmem>>, vector<16x128xf32>,
    return
  }
  func.func @transform_0(%arg0: i32) -> (i32, i32) {
    %c0_i32 = arith.constant 0 : i32
    %c0_i32_0 = arith.constant 0 : i32
    return %arg0, %c0_i32 : i32, i32
  }
  func.func @transform_1(%arg0: i32) -> (i32, i32) {
    %c0_i32 = arith.constant 0 : i32
    %c0_i32_0 = arith.constant 0 : i32
    %c0_i32_1 = arith.constant 0 : i32
    return %c0_i32, %c0_i32_0 : i32, i32
  }
  func.func @transform_2(%arg0: i32) -> (i32, i32) {
    %c0_i32 = arith.constant 0 : i32
    %c0_i32_0 = arith.constant 0 : i32
    %c0_i32_1 = arith.constant 0 : i32
    return %c0_i32, %c0_i32_0 : i32, i32
  }
  func.func @transform_3(%arg0: i32) -> (i32, i32) {
    %c0_i32 = arith.constant 0 : i32
    %c0_i32_0 = arith.constant 0 : i32
    %c0_i32_1 = arith.constant 0 : i32
    return %c0_i32, %c0_i32_0 : i32, i32
  }
  func.func @transform_4(%arg0: i32) -> (i32, i32) {
    %c0_i32 = arith.constant 0 : i32
    %c0_i32_0 = arith.constant 0 : i32
    %c0_i32_1 = arith.constant 0 : i32
    return %c0_i32, %c0_i32_0 : i32, i32
  }
  func.func @transform_5(%arg0: i32) -> (i32, i32) {
    %c0_i32 = arith.constant 0 : i32
    %c0_i32_0 = arith.constant 0 : i32
    %c0_i32_1 = arith.constant 0 : i32
    return %c0_i32, %c0_i32_0 : i32, i32
  }
  func.func @transform_6(%arg0: i32) -> (i32, i32) {
    %c0_i32 = arith.constant 0 : i32
    %c0_i32_0 = arith.constant 0 : i32
    %c0_i32_1 = arith.constant 0 : i32
    return %c0_i32, %c0_i32_0 : i32, i32
  }
  func.func @transform_7(%arg0: i32) -> (i32, i32) {
    %c0_i32 = arith.constant 0 : i32
    %c0_i32_0 = arith.constant 0 : i32
    return %arg0, %c0_i32 : i32, i32
  }
}

</mosaic_0001>

<llo_original>
// kernel: detection_head_forward.1
$region0: #{detection_head_forward.1}
  #allocation0 [shape = 'u32[]', space=smem, size = 0x4, offset = 0x4, fixed_abs, tag = 'smem constant byte address 0x4 - core index']
  #allocation1 [shape = 'u32[144,128]{1,0:T(1,128)}', space=vmem, size = 0x12000, scoped, tag = 'internal scratch']
  %s0 = inlined_call_operand.vmem [shape: bf16[16,64], index: 0, kind: input, shape index: {}]
  %s1 = inlined_call_operand.vmem [shape: bf16[64,128], index: 1, kind: input, shape index: {}]
  %s2 = inlined_call_operand.vmem [shape: f32[1,128], index: 2, kind: input, shape index: {}]
  %s3 = inlined_call_operand.hbm [shape: bf16[128,128], index: 3, kind: input, shape index: {}]
  %s4 = inlined_call_operand.vmem [shape: f32[1,128], index: 4, kind: input, shape index: {}]
  %s5 = inlined_call_operand.hbm [shape: bf16[128,128], index: 5, kind: input, shape index: {}]
  %s6 = inlined_call_operand.vmem [shape: f32[1,128], index: 6, kind: input, shape index: {}]
  %s7 = inlined_call_operand.vmem [shape: f32[16,128], index: 7, kind: output, shape index: {}]
  %s8 = sld [smem:[#allocation0]]
  $region46: #{detection_head_forward.1} parent=0
    _
  %s10 = ssub.s32 1, %s8
  %s11 = scalar_select 0, %s10, %s8
  $region1: #{detection_head_forward.1} parent=0
    #allocation2 [shape = 'u8[32768]{0}', space=vmem, size = 0x8000, scoped, tag = 'input window, operand 3, single buffered']
    #allocation3 [shape = 's32[1]{0}', space=sflag, size = 0x4, scoped, tag = 'scoped memory for detection_head_forward.1']
    #allocation4 [shape = 'u8[32768]{0}', space=vmem, size = 0x8000, scoped, tag = 'input window, operand 5, single buffered']
    #allocation5 [shape = 's32[1]{0}', space=sflag, size = 0x4, scoped, tag = 'scoped memory for detection_head_forward.1']
    %12 = vsyncpa [#allocation3], 0
    %13 = vsyncpa [#allocation5], 0
    // Predicated region
    $region2: #{detection_head_forward.1} parent=1 // pred_check
      _
    $region3: #{detection_head_forward.1} parent=1 // pred_check_branch
      %15 = sbr.rel (0) target = $region5
    $region4: #{detection_head_forward.1} parent=1 // pred_region
      _
    $region5: #{detection_head_forward.1} parent=1 // pred_fallthru
      _
    // Predicated region
    $region6: #{detection_head_forward.1} parent=1 // pred_check
      _
    $region7: #{detection_head_forward.1} parent=1 // pred_check_branch
      %17 = sbr.rel (0) target = $region9
    $region8: #{detection_head_forward.1} parent=1 // pred_region
      _
    $region9: #{detection_head_forward.1} parent=1 // pred_fallthru
      _
    // Predicated region
    $region10: #{detection_head_forward.1} parent=1 // pred_check
      _
    $region11: #{detection_head_forward.1} parent=1 // pred_check_branch
      %19 = sbr.rel (0) target = $region13
    $region12: #{detection_head_forward.1} parent=1 // pred_region
      _
    $region13: #{detection_head_forward.1} parent=1 // pred_fallthru
      _
    // Predicated region
    $region14: #{detection_head_forward.1} parent=1 // pred_check
      _
    $region15: #{detection_head_forward.1} parent=1 // pred_check_branch
      %21 = sbr.rel (0) target = $region17
    $region16: #{detection_head_forward.1} parent=1 // pred_region
      %s23 = ssub.s32 1024, 1024
      %24 = vsyncadd [#allocation3], %s23
      %s25 = sshll.u32 [#allocation2], 4
      %s26 = int_to_ptr.vmem [resolvable:$true] %s25
      %31 = dma.hbm_to_vmem [thread:$0]  %s3, 1024, %s26, [#allocation3], 64, 64, 4
    $region17: #{detection_head_forward.1} parent=1 // pred_fallthru
      _
    // Predicated region
    $region18: #{detection_head_forward.1} parent=1 // pred_check
      _
    $region19: #{detection_head_forward.1} parent=1 // pred_check_branch
      %33 = sbr.rel (0) target = $region21
    $region20: #{detection_head_forward.1} parent=1 // pred_region
      _
    $region21: #{detection_head_forward.1} parent=1 // pred_fallthru
      _
    // Predicated region
    $region22: #{detection_head_forward.1} parent=1 // pred_check
      _
    $region23: #{detection_head_forward.1} parent=1 // pred_check_branch
      %35 = sbr.rel (0) target = $region25
    $region24: #{detection_head_forward.1} parent=1 // pred_region
      %s37 = ssub.s32 1024, 1024
      %38 = vsyncadd [#allocation5], %s37
      %s39 = sshll.u32 [#allocation4], 4
      %s40 = int_to_ptr.vmem [resolvable:$true] %s39
      %45 = dma.hbm_to_vmem [thread:$0]  %s5, 1024, %s40, [#allocation5], 64, 64, 4
    $region25: #{detection_head_forward.1} parent=1 // pred_fallthru
      _
    // Predicated region
    $region26: #{detection_head_forward.1} parent=1 // pred_check
      _
    $region27: #{detection_head_forward.1} parent=1 // pred_check_branch
      %47 = sbr.rel (0) target = $region29
    $region28: #{detection_head_forward.1} parent=1 // pred_region
      _
    $region29: #{detection_head_forward.1} parent=1 // pred_fallthru
      _
    // Predicated region
    $region30: #{detection_head_forward.1} parent=1 // pred_check
      _
    $region31: #{detection_head_forward.1} parent=1 // pred_check_branch
      %49 = sbr.rel (0) target = $region33
    $region32: #{detection_head_forward.1} parent=1 // pred_region
      %50 = dma.done [#allocation3], 1024
    $region33: #{detection_head_forward.1} parent=1 // pred_fallthru
      _
    // Predicated region
    $region34: #{detection_head_forward.1} parent=1 // pred_check
      _
    $region35: #{detection_head_forward.1} parent=1 // pred_check_branch
      %52 = sbr.rel (0) target = $region37
    $region36: #{detection_head_forward.1} parent=1 // pred_region
      %53 = dma.done [#allocation5], 1024
    $region37: #{detection_head_forward.1} parent=1 // pred_fallthru
      _
    %v55 = vlaneseq
    %v56 = vand.u32 %v55, 127
    %vm57 = vcmp.ge.s32.totalorder %v56, 4
    %vm58 = vcmp.lt.s32.totalorder %v56, 8
    %vm59 = vmand %vm57, %vm58
    %v60 = vld [vmem:[%s0] sm:$0xf]
    %v61 = vld [vmem:[%s0 + $0x4] sm:$0xf]
    %v62 = vld [vmem:[%s1] sm:$0xf]
    %v63 = vld [vmem:[%s1 + $0x4] sm:$0xf]
    %v64 = vld [vmem:[%s1 + $0x8] sm:$0xf]
    %v65 = vld [vmem:[%s1 + $0xc] sm:$0xf]
    %v66 = vld [vmem:[%s1 + $0x10] sm:$0xf]
    %v67 = vld [vmem:[%s1 + $0x14] sm:$0xf]
    %v68 = vld [vmem:[%s1 + $0x18] sm:$0xf]
    %v69 = vld [vmem:[%s1 + $0x1c] sm:$0xf]
    %v70 = vld [vmem:[%s2] sm:$0x1]
    %v72 = vlaneseq
    %v73 = vshrl.u32 %v72, 7
    %v74 = vsub.s32 0, %v73
    %v75 = vrot.slane %v70, %v74
    %v79 = vunpack.c.l.b16 %v60
    %v80 = vunpack.c.l.b16 %v61
    %v81 = vpack.c.b16 %v80, %v79
    %v90 = vunpack.c.l.b16 %v62
    %v91 = vunpack.c.l.b16 %v63
    %v92 = vunpack.c.l.b16 %v64
    %v93 = vunpack.c.l.b16 %v65
    %v94 = vunpack.c.l.b16 %v66
    %v95 = vunpack.c.l.b16 %v67
    %v96 = vunpack.c.l.b16 %v68
    %v97 = vunpack.c.l.b16 %v69
    %v98 = vpack.c.b16 %v91, %v90
    %v99 = vpack.c.b16 %v93, %v92
    %v100 = vpack.c.b16 %v95, %v94
    %v101 = vpack.c.b16 %v97, %v96
    %vm106 = vcmask 523264
    %v108 = vsel %vm106, %v81, 0
    %110 = vmatprep.subr.bf16.mxu0 0
    %111 = vmatpush1.bf16.msra.mxu0 %v98
    %112 = vmatprep.subr.bf16.mxu0 0
    %113 = vmatpush1.bf16.msra.mxu0 %v99
    %114 = vmatprep.subr.bf16.mxu0 0
    %115 = vmatpush1.bf16.msra.mxu0 %v100
    %116 = vmatprep.subr.bf16.mxu0 0
    %117 = vmatpush1.bf16.msra.mxu0 %v101
    %118 = vmatprep.subr.bf16.mxu0 0
    %119 = vmatpush1.bf16.msra.mxu0 0
    %120 = vmatprep.subr.bf16.mxu0 0
    %121 = vmatpush1.bf16.msra.mxu0 0
    %122 = vmatprep.subr.bf16.mxu0 0
    %123 = vmatpush1.bf16.msra.mxu0 0
    %124 = vmatprep.subr.bf16.mxu0 0
    %125 = vmatpush1.bf16.msra.mxu0 0
    %126 = vmatprep.subr.bf16.mxu0 0
    %127 = vmatpush1.bf16.msra.mxu0 0
    %128 = vmatprep.subr.bf16.mxu0 0
    %129 = vmatpush1.bf16.msra.mxu0 0
    %130 = vmatprep.subr.bf16.mxu0 0
    %131 = vmatpush1.bf16.msra.mxu0 0
    %132 = vmatprep.subr.bf16.mxu0 0
    %133 = vmatpush1.bf16.msra.mxu0 0
    %134 = vmatprep.subr.bf16.mxu0 0
    %135 = vmatpush1.bf16.msra.mxu0 0
    %136 = vmatprep.subr.bf16.mxu0 0
    %137 = vmatpush1.bf16.msra.mxu0 0
    %138 = vmatprep.subr.bf16.mxu0 0
    %139 = vmatpush1.bf16.msra.mxu0 0
    %140 = vmatprep.subr.bf16.mxu0 0
    %141 = vmatpush1.bf16.msra.mxu0 0
    %142 = vmatprep.mubr.bf16.mxu0 0
    %143 = vmatmul.mubr.bf16.gmra.mrb[0].mxu0 %v108
    %v144 = vpop.f32.mrb[0].mxu0
    %v145 = vadd.f32 %v75, %v144
    %v146 = vpop.f32.mrb[0].mxu0
    %v147 = vpop.f32.mrb[0].mxu0
    %v148 = vadd.f32 %v75, %v147
    %v149 = vpop.f32.mrb[0].mxu0
    %150 = vdwg.mxu0
    %v151 = vmax.f32 %v145, 0.0
    %v152 = vmax.f32 %v148, 0.0
    %v153 = vpack.c.bf16 %v152, %v151
    %v154 = vld [vmem:[#allocation2] sm:$0xf]
    %v155 = vld [vmem:[#allocation2 + $0x4] sm:$0xf]
    %v156 = vld [vmem:[#allocation2 + $0x8] sm:$0xf]
    %v157 = vld [vmem:[#allocation2 + $0xc] sm:$0xf]
    %v158 = vld [vmem:[#allocation2 + $0x10] sm:$0xf]
    %v159 = vld [vmem:[#allocation2 + $0x14] sm:$0xf]
    %v160 = vld [vmem:[#allocation2 + $0x18] sm:$0xf]
    %v161 = vld [vmem:[#allocation2 + $0x1c] sm:$0xf]
    %v162 = vld [vmem:[#allocation2 + $0x20] sm:$0xf]
    %v163 = vld [vmem:[#allocation2 + $0x24] sm:$0xf]
    %v164 = vld [vmem:[#allocation2 + $0x28] sm:$0xf]
    %v165 = vld [vmem:[#allocation2 + $0x2c] sm:$0xf]
    %v166 = vld [vmem:[#allocation2 + $0x30] sm:$0xf]
    %v167 = vld [vmem:[#allocation2 + $0x34] sm:$0xf]
    %v168 = vld [vmem:[#allocation2 + $0x38] sm:$0xf]
    %v169 = vld [vmem:[#allocation2 + $0x3c] sm:$0xf]
    %v170 = vld [vmem:[%s4] sm:$0x1]
    %v172 = vlaneseq
    %v173 = vshrl.u32 %v172, 7
    %v174 = vsub.s32 0, %v173
    %v175 = vrot.slane %v170, %v174
    %v193 = vunpack.c.l.b16 %v154
    %v194 = vunpack.c.l.b16 %v155
    %v195 = vunpack.c.l.b16 %v156
    %v196 = vunpack.c.l.b16 %v157
    %v197 = vunpack.c.l.b16 %v158
    %v198 = vunpack.c.l.b16 %v159
    %v199 = vunpack.c.l.b16 %v160
    %v200 = vunpack.c.l.b16 %v161
    %v201 = vunpack.c.l.b16 %v162
    %v202 = vunpack.c.l.b16 %v163
    %v203 = vunpack.c.l.b16 %v164
    %v204 = vunpack.c.l.b16 %v165
    %v205 = vunpack.c.l.b16 %v166
    %v206 = vunpack.c.l.b16 %v167
    %v207 = vunpack.c.l.b16 %v168
    %v208 = vunpack.c.l.b16 %v169
    %v209 = vpack.c.b16 %v194, %v193
    %v210 = vpack.c.b16 %v196, %v195
    %v211 = vpack.c.b16 %v198, %v197
    %v212 = vpack.c.b16 %v200, %v199
    %v213 = vpack.c.b16 %v202, %v201
    %v214 = vpack.c.b16 %v204, %v203
    %v215 = vpack.c.b16 %v206, %v205
    %v216 = vpack.c.b16 %v208, %v207
    %225 = vmatprep.subr.bf16.mxu0 0
    %226 = vmatpush1.bf16.msra.mxu0 %v209
    %227 = vmatprep.subr.bf16.mxu0 0
    %228 = vmatpush1.bf16.msra.mxu0 %v210
    %229 = vmatprep.subr.bf16.mxu0 0
    %230 = vmatpush1.bf16.msra.mxu0 %v211
    %231 = vmatprep.subr.bf16.mxu0 0
    %232 = vmatpush1.bf16.msra.mxu0 %v212
    %233 = vmatprep.subr.bf16.mxu0 0
    %234 = vmatpush1.bf16.msra.mxu0 %v213
    %235 = vmatprep.subr.bf16.mxu0 0
    %236 = vmatpush1.bf16.msra.mxu0 %v214
    %237 = vmatprep.subr.bf16.mxu0 0
    %238 = vmatpush1.bf16.msra.mxu0 %v215
    %239 = vmatprep.subr.bf16.mxu0 0
    %240 = vmatpush1.bf16.msra.mxu0 %v216
    %241 = vmatprep.subr.bf16.mxu0 0
    %242 = vmatpush1.bf16.msra.mxu0 0
    %243 = vmatprep.subr.bf16.mxu0 0
    %244 = vmatpush1.bf16.msra.mxu0 0
    %245 = vmatprep.subr.bf16.mxu0 0
    %246 = vmatpush1.bf16.msra.mxu0 0
    %247 = vmatprep.subr.bf16.mxu0 0
    %248 = vmatpush1.bf16.msra.mxu0 0
    %249 = vmatprep.subr.bf16.mxu0 0
    %250 = vmatpush1.bf16.msra.mxu0 0
    %251 = vmatprep.subr.bf16.mxu0 0
    %252 = vmatpush1.bf16.msra.mxu0 0
    %253 = vmatprep.subr.bf16.mxu0 0
    %254 = vmatpush1.bf16.msra.mxu0 0
    %255 = vmatprep.subr.bf16.mxu0 0
    %256 = vmatpush1.bf16.msra.mxu0 0
    %257 = vmatprep.mubr.bf16.mxu0 0
    %258 = vmatmul.mubr.bf16.gmra.mrb[0].mxu0 %v153
    %v259 = vpop.f32.mrb[0].mxu0
    %v260 = vadd.f32 %v175, %v259
    %v261 = vpop.f32.mrb[0].mxu0
    %v262 = vpop.f32.mrb[0].mxu0
    %v263 = vadd.f32 %v175, %v262
    %v264 = vpop.f32.mrb[0].mxu0
    %265 = vdwg.mxu0
    %v266 = vmax.f32 %v260, 0.0
    %v267 = vmax.f32 %v263, 0.0
    %v268 = vpack.c.bf16 %v267, %v266
    %v269 = vld [vmem:[#allocation4] sm:$0xf]
    %v270 = vld [vmem:[#allocation4 + $0x4] sm:$0xf]
    %v271 = vld [vmem:[#allocation4 + $0x8] sm:$0xf]
    %v272 = vld [vmem:[#allocation4 + $0xc] sm:$0xf]
    %v273 = vld [vmem:[#allocation4 + $0x10] sm:$0xf]
    %v274 = vld [vmem:[#allocation4 + $0x14] sm:$0xf]
    %v275 = vld [vmem:[#allocation4 + $0x18] sm:$0xf]
    %v276 = vld [vmem:[#allocation4 + $0x1c] sm:$0xf]
    %v277 = vld [vmem:[#allocation4 + $0x20] sm:$0xf]
    %v278 = vld [vmem:[#allocation4 + $0x24] sm:$0xf]
    %v279 = vld [vmem:[#allocation4 + $0x28] sm:$0xf]
    %v280 = vld [vmem:[#allocation4 + $0x2c] sm:$0xf]
    %v281 = vld [vmem:[#allocation4 + $0x30] sm:$0xf]
    %v282 = vld [vmem:[#allocation4 + $0x34] sm:$0xf]
    %v283 = vld [vmem:[#allocation4 + $0x38] sm:$0xf]
    %v284 = vld [vmem:[#allocation4 + $0x3c] sm:$0xf]
    %v285 = vld [vmem:[%s6] sm:$0x1]
    %v287 = vlaneseq
    %v288 = vshrl.u32 %v287, 7
    %v289 = vsub.s32 0, %v288
    %v290 = vrot.slane %v285, %v289
    %v308 = vunpack.c.l.b16 %v269
    %v309 = vunpack.c.l.b16 %v270
    %v310 = vunpack.c.l.b16 %v271
    %v311 = vunpack.c.l.b16 %v272
    %v312 = vunpack.c.l.b16 %v273
    %v313 = vunpack.c.l.b16 %v274
    %v314 = vunpack.c.l.b16 %v275
    %v315 = vunpack.c.l.b16 %v276
    %v316 = vunpack.c.l.b16 %v277
    %v317 = vunpack.c.l.b16 %v278
    %v318 = vunpack.c.l.b16 %v279
    %v319 = vunpack.c.l.b16 %v280
    %v320 = vunpack.c.l.b16 %v281
    %v321 = vunpack.c.l.b16 %v282
    %v322 = vunpack.c.l.b16 %v283
    %v323 = vunpack.c.l.b16 %v284
    %v324 = vpack.c.b16 %v309, %v308
    %v325 = vpack.c.b16 %v311, %v310
    %v326 = vpack.c.b16 %v313, %v312
    %v327 = vpack.c.b16 %v315, %v314
    %v328 = vpack.c.b16 %v317, %v316
    %v329 = vpack.c.b16 %v319, %v318
    %v330 = vpack.c.b16 %v321, %v320
    %v331 = vpack.c.b16 %v323, %v322
    %340 = vmatprep.subr.bf16.mxu0 0
    %341 = vmatpush1.bf16.msra.mxu0 %v324
    %342 = vmatprep.subr.bf16.mxu0 0
    %343 = vmatpush1.bf16.msra.mxu0 %v325
    %344 = vmatprep.subr.bf16.mxu0 0
    %345 = vmatpush1.bf16.msra.mxu0 %v326
    %346 = vmatprep.subr.bf16.mxu0 0
    %347 = vmatpush1.bf16.msra.mxu0 %v327
    %348 = vmatprep.subr.bf16.mxu0 0
    %349 = vmatpush1.bf16.msra.mxu0 %v328
    %350 = vmatprep.subr.bf16.mxu0 0
    %351 = vmatpush1.bf16.msra.mxu0 %v329
    %352 = vmatprep.subr.bf16.mxu0 0
    %353 = vmatpush1.bf16.msra.mxu0 %v330
    %354 = vmatprep.subr.bf16.mxu0 0
    %355 = vmatpush1.bf16.msra.mxu0 %v331
    %356 = vmatprep.subr.bf16.mxu0 0
    %357 = vmatpush1.bf16.msra.mxu0 0
    %358 = vmatprep.subr.bf16.mxu0 0
    %359 = vmatpush1.bf16.msra.mxu0 0
    %360 = vmatprep.subr.bf16.mxu0 0
    %361 = vmatpush1.bf16.msra.mxu0 0
    %362 = vmatprep.subr.bf16.mxu0 0
    %363 = vmatpush1.bf16.msra.mxu0 0
    %364 = vmatprep.subr.bf16.mxu0 0
    %365 = vmatpush1.bf16.msra.mxu0 0
    %366 = vmatprep.subr.bf16.mxu0 0
    %367 = vmatpush1.bf16.msra.mxu0 0
    %368 = vmatprep.subr.bf16.mxu0 0
    %369 = vmatpush1.bf16.msra.mxu0 0
    %370 = vmatprep.subr.bf16.mxu0 0
    %371 = vmatpush1.bf16.msra.mxu0 0
    %372 = vmatprep.mubr.bf16.mxu0 0
    %373 = vmatmul.mubr.bf16.gmra.mrb[0].mxu0 %v268
    %v374 = vpop.f32.mrb[0].mxu0
    %v375 = vadd.f32 %v290, %v374
    %v376 = vpop.f32.mrb[0].mxu0
    %v377 = vpop.f32.mrb[0].mxu0
    %v378 = vadd.f32 %v290, %v377
    %v379 = vpop.f32.mrb[0].mxu0
    %380 = vdwg.mxu0
    %v381 = vsel %vm59, %v375, -inf
    %v382 = vsel %vm59, %v378, -inf
    %383 = vmax.xlane.f32.xlu0 %v381
    %v384 = vpop.xlane.xlu0 %383
    %385 = vmax.xlane.f32.xlu0 %v382
    %v386 = vpop.xlane.xlu0 %385
    %v387 = vsub.f32 %v375, %v384
    %v388 = vsub.f32 %v378, %v386
    %v389 = vsel %vm59, %v387, -inf
    %v390 = vsel %vm59, %v388, -inf
    %v391 = vmul.f32 %v389, 1.442695
    %v392 = vpow.pop %v391
    %v393 = vmul.f32 %v390, 1.442695
    %v394 = vpow.pop %v393
    %395 = vadd.xlane.f32.xlu0 %v392
    %v396 = vpop.xlane.xlu0 %395
    %397 = vadd.xlane.f32.xlu0 %v394
    %v398 = vpop.xlane.xlu0 %397
    %v399 = vrcp.pop %v396
    %v400 = vrcp.pop %v398
    %v401 = vmul.f32 %v392, %v399
    %v402 = vmul.f32 %v394, %v400
    %v403 = vsel %vm59, %v401, %v375
    %v404 = vsel %vm59, %v402, %v378
    %405 = vst [vmem:[%s7] sm:$0xff] %v403
    %406 = vst [vmem:[%s7 + $0x8] sm:$0xff] %v404
    // Predicated region
    $region38: #{detection_head_forward.1} parent=1 // pred_check
      _
    $region39: #{detection_head_forward.1} parent=1 // pred_check_branch
      %408 = sbr.rel (0) target = $region41
    $region40: #{detection_head_forward.1} parent=1 // pred_region
      _
    $region41: #{detection_head_forward.1} parent=1 // pred_fallthru
      _
    // Predicated region
    $region42: #{detection_head_forward.1} parent=1 // pred_check
      _
    $region43: #{detection_head_forward.1} parent=1 // pred_check_branch
      %410 = sbr.rel (0) target = $region45
    $region44: #{detection_head_forward.1} parent=1 // pred_region
      _
    $region45: #{detection_head_forward.1} parent=1 // pred_fallthru
      _
    %411 = vsyncpa [#allocation3], 1
    %412 = vsyncpa [#allocation5], 1

</llo_original>
